<compile_context>
chip_gen: v5e
topology: v5e:2x2
jax: 0.10.0
libtpu: 0.0.40
codegen_flags: <defaults>
</compile_context>

<pallas_src>
import functools

import jax
import jax.numpy as jnp
from jax.experimental import pallas as pl
from jax.experimental.pallas import tpu as pltpu


def _round_up(x, m):
  return ((x + m - 1) // m) * m


def _conv1d_block_kernel(
    x_ref,        # (1, 1, Tw, Cin)  halo'd input window, f32
    alpha_ref,    # (2,) f32 in SMEM: [prelu1_alpha, prelu2_alpha]
    w1_ref,       # (Cin, Cc) bf16
    b1_ref, g1_ref, be1_ref,          # (1, Cc) f32
    wd_ref,       # (K, Cc) f32 depthwise taps
    bd_ref, g2_ref, be2_ref,          # (1, Cc) f32
    ws_ref,       # (Cc, Cin) bf16
    bs_ref,       # (1, Cin) f32
    o_ref,        # (1, 1, Tt, Cin)
    *, kernel_size, dilation, pad_left, t_tile, seq_len, eps):
  tt = t_tile
  tw = x_ref.shape[2]
  cc = w1_ref.shape[1]
  inv_cc = 1.0 / float(cc)

  a1 = alpha_ref[0]
  a2 = alpha_ref[1]

  # ---- pointwise conv 1x1 on the halo'd window: (Tw, Cin) @ (Cin, Cc) ----
  xw = x_ref[0, 0]
  y = jnp.dot(xw.astype(jnp.bfloat16), w1_ref[...],
              preferred_element_type=jnp.float32) + b1_ref[...]
  # PReLU (single shared alpha, PyTorch default)
  y = jnp.where(y >= 0, y, y * a1)
  # channel-wise LayerNorm, fused single-pass stats (f32)
  s1 = jnp.sum(y, axis=-1, keepdims=True)
  s2 = jnp.sum(y * y, axis=-1, keepdims=True)
  mean = s1 * inv_cc
  var = jnp.maximum(s2 * inv_cc - mean * mean, 0.0)
  y = (y - mean) * jax.lax.rsqrt(var + eps) * g1_ref[...] + be1_ref[...]

  # Zero rows of the window that fall in the zero-padded time region: the
  # depthwise conv must see zeros there (the reference zero-pads *after* the
  # first pointwise/PReLU/LN stage, and stage1(0) != 0).
  row = jax.lax.broadcasted_iota(jnp.int32, (tw, 1), 0)
  gpos = row + pl.program_id(1) * tt          # position within padded time
  valid = (gpos >= pad_left) & (gpos < pad_left + seq_len)
  y = jnp.where(valid, y, 0.0)

  # ---- depthwise conv along time: shifted reads of the resident window ----
  acc = bd_ref[...] + wd_ref[0:1, :] * y[0:tt, :]
  for k in range(1, kernel_size):             # static, short
    off = k * dilation
    acc = acc + wd_ref[k:k + 1, :] * y[off:off + tt, :]
  z = jnp.where(acc >= 0, acc, acc * a2)
  s1 = jnp.sum(z, axis=-1, keepdims=True)
  s2 = jnp.sum(z * z, axis=-1, keepdims=True)
  mean = s1 * inv_cc
  var = jnp.maximum(s2 * inv_cc - mean * mean, 0.0)
  z = (z - mean) * jax.lax.rsqrt(var + eps) * g2_ref[...] + be2_ref[...]

  # ---- pointwise conv back to Cin + residual ----
  out = jnp.dot(z.astype(jnp.bfloat16), ws_ref[...],
                preferred_element_type=jnp.float32) + bs_ref[...]
  x_main = x_ref[0, 0, pad_left:pad_left + tt, :].astype(jnp.float32)
  o_ref[0, 0] = (x_main + out).astype(o_ref.dtype)


def conv1d_block(x_ntc, params, *, kernel_size, dilation, causal,
                 eps=1e-5, time_tile=None):
  """x_ntc: (N, T, Cin) float32. Returns (N, T, Cin)."""
  N, T, Cin = x_ntc.shape
  Cc = params["w1"].shape[1]
  pad_value = dilation * (kernel_size - 1)
  if causal:
    pad_left, pad_right = pad_value, 0
  else:
    assert pad_value % 2 == 0, (
        "non-causal block needs even dilation*(kernel_size-1)")
    pad_left = pad_right = pad_value // 2
  pad = pad_left + pad_right

  # Time tile: multiple of 8 sublanes, ~512 rows per step for realistic T.
  if time_tile is None:
    time_tile = min(512, _round_up(T, 8))
  Tt = max(8, _round_up(time_tile, 8))
  T_round = _round_up(T, Tt)
  num_t = T_round // Tt
  Tw = Tt + pad

  # Zero-pad time: [pad_left | T data | pad_right + round-up], then build the
  # halo'd overlapping windows (stride Tt, length Tt + pad) in the wrapper.
  x_pad = jnp.pad(x_ntc, ((0, 0), (pad_left, pad_right + (T_round - T)), (0, 0)))
  x_win = jnp.stack([x_pad[:, j * Tt:j * Tt + Tw, :] for j in range(num_t)],
                    axis=1)                            # (N, num_t, Tw, Cin)

  # Scalar PReLU alphas packed for SMEM.
  alphas = jnp.concatenate([params["a1"].reshape(-1)[:1],
                            params["a2"].reshape(-1)[:1]]).astype(jnp.float32)
  # bf16 weights for the two MXU matmuls (f32 accumulation in-kernel).
  w1_bf = params["w1"].astype(jnp.bfloat16)
  ws_bf = params["ws"].astype(jnp.bfloat16)

  kern = functools.partial(
      _conv1d_block_kernel,
      kernel_size=kernel_size, dilation=dilation, pad_left=pad_left,
      t_tile=Tt, seq_len=T, eps=eps)

  def rep(shape):
    return pl.BlockSpec(shape, lambda n, j: (0,) * len(shape))

  grid_spec = pltpu.PrefetchScalarGridSpec(
      num_scalar_prefetch=0,
      grid=(N, num_t),
      in_specs=[
          pl.BlockSpec((1, 1, Tw, Cin), lambda n, j: (n, j, 0, 0)),   # x windows
          pl.BlockSpec(memory_space=pltpu.MemorySpace.SMEM),          # alphas
          rep((Cin, Cc)),                     # w1 (bf16)
          rep((1, Cc)),                       # b1
          rep((1, Cc)),                       # gamma1
          rep((1, Cc)),                       # beta1
          rep((kernel_size, Cc)),             # depthwise weights
          rep((1, Cc)),                       # depthwise bias
          rep((1, Cc)),                       # gamma2
          rep((1, Cc)),                       # beta2
          rep((Cc, Cin)),                     # sconv weight (bf16)
          rep((1, Cin)),                      # sconv bias
      ],
      out_specs=pl.BlockSpec((1, 1, Tt, Cin), lambda n, j: (n, j, 0, 0)),
  )

  out = pl.pallas_call(
      kern,
      out_shape=jax.ShapeDtypeStruct((N, num_t, Tt, Cin), x_ntc.dtype),
      grid_spec=grid_spec,
      compiler_params=pltpu.CompilerParams(
          dimension_semantics=("parallel", "parallel")),
  )(x_win, alphas, w1_bf, params["b1"], params["g1"], params["be1"],
    params["wd"], params["bd"], params["g2"], params["be2"],
    ws_bf, params["bs"])

  return out.reshape(N, T_round, Cin)[:, :T, :]


def reference(x, p, *, kernel_size, dilation, causal, eps=1e-5):
  """Pure-JAX f32 reference of the same forward (NTC layout)."""
  y = jnp.einsum("ntc,cd->ntd", x, p["w1"]) + p["b1"]
  y = jnp.where(y >= 0, y, y * p["a1"])
  m = y.mean(-1, keepdims=True); v = ((y - m) ** 2).mean(-1, keepdims=True)
  y = (y - m) / jnp.sqrt(v + eps) * p["g1"] + p["be1"]
  pad_value = dilation * (kernel_size - 1)
  pl_, pr_ = (pad_value, 0) if causal else (pad_value // 2, pad_value // 2)
  yp = jnp.pad(y, ((0, 0), (pl_, pr_), (0, 0)))
  acc = jnp.broadcast_to(p["bd"], y.shape)
  for k in range(kernel_size):
    acc = acc + p["wd"][k] * yp[:, k * dilation:k * dilation + y.shape[1], :]
  y = acc
  y = jnp.where(y >= 0, y, y * p["a2"])
  m = y.mean(-1, keepdims=True); v = ((y - m) ** 2).mean(-1, keepdims=True)
  y = (y - m) / jnp.sqrt(v + eps) * p["g2"] + p["be2"]
  out = jnp.einsum("ntc,cd->ntd", y, p["ws"]) + p["bs"]
  return x + out


def init_params(key, in_channels, conv_channels, kernel_size):
  ks = jax.random.split(key, 6)
  s1 = 1.0 / jnp.sqrt(in_channels)
  sd = 1.0 / jnp.sqrt(kernel_size)
  s2 = 1.0 / jnp.sqrt(conv_channels)
  return {
      # 1x1 conv: stored transposed (Cin, Cc) so the kernel does x @ w1
      "w1": jax.random.uniform(ks[0], (in_channels, conv_channels), jnp.float32, -s1, s1),
      "b1": jax.random.uniform(ks[1], (1, conv_channels), jnp.float32, -s1, s1),
      "a1": jnp.full((1, 1), 0.25, jnp.float32),           # PReLU init
      "g1": jnp.ones((1, conv_channels), jnp.float32),     # cLN weight
      "be1": jnp.zeros((1, conv_channels), jnp.float32),   # cLN bias
      # depthwise conv: PyTorch (Cc, 1, K) stored as (K, Cc)
      "wd": jax.random.uniform(ks[2], (kernel_size, conv_channels), jnp.float32, -sd, sd),
      "bd": jax.random.uniform(ks[3], (1, conv_channels), jnp.float32, -sd, sd),
      "a2": jnp.full((1, 1), 0.25, jnp.float32),
      "g2": jnp.ones((1, conv_channels), jnp.float32),
      "be2": jnp.zeros((1, conv_channels), jnp.float32),
      # sconv 1x1: stored transposed (Cc, Cin)
      "ws": jax.random.uniform(ks[4], (conv_channels, in_channels), jnp.float32, -s2, s2),
      "bs": jax.random.uniform(ks[5], (1, in_channels), jnp.float32, -s2, s2),
  }
# TODO(synk): only the default norm='cLN' path is implemented; 'BN'/'gLN' variants are not.


if __name__ == "__main__":
  # Small but lane-dense shapes (channels multiple of 128 per perf review).
  N, T = 2, 40
  in_channels, conv_channels = 128, 128
  kernel_size = 3

  key = jax.random.PRNGKey(0)
  kx, kp = jax.random.split(key)
  params = init_params(kp, in_channels, conv_channels, kernel_size)

  # PyTorch-layout input (N, C, T), transposed to kernel layout (N, T, C).
  x_nct = jax.random.normal(kx, (N, in_channels, T), jnp.float32)
  x_ntc = jnp.transpose(x_nct, (0, 2, 1))

  # Non-causal, dilated, multi-tile time axis (exercises the halo path).
  out = conv1d_block(x_ntc, params, kernel_size=kernel_size,
                     dilation=2, causal=False, time_tile=16)
  out = jax.block_until_ready(out)
  ref = reference(x_ntc, params, kernel_size=kernel_size, dilation=2, causal=False)
  assert out.shape == (N, T, in_channels)
  # bf16 MXU matmuls vs pure-f32 reference -> loosened tolerance.
  assert jnp.allclose(out, ref, atol=5e-2, rtol=5e-2), "mismatch (non-causal)"

  # Causal variant, auto time tile (single tile path).
  out_c = conv1d_block(x_ntc, params, kernel_size=kernel_size,
                       dilation=1, causal=True)
  out_c = jax.block_until_ready(out_c)
  ref_c = reference(x_ntc, params, kernel_size=kernel_size, dilation=1, causal=True)
  assert jnp.allclose(out_c, ref_c, atol=5e-2, rtol=5e-2), "mismatch (causal)"

  # Back to PyTorch layout if desired: (N, C, T)
  _ = jnp.transpose(out, (0, 2, 1))
  print("KERNEL_OK")
</pallas_src>

<mosaic_0001>
module attributes {stable_mosaic.version = 11 : i64} {
  func.func @_conv1d_block_kernel(%arg0: i32, %arg1: i32, %arg2: memref<1x1x20x128xf32, #tpu.memory_space<vmem>>, %arg3: memref<2xf32, #tpu.memory_space<smem>>, %arg4: memref<128x128xbf16, #tpu.memory_space<vmem>>, %arg5: memref<1x128xf32, #tpu.memory_space<vmem>>, %arg6: memref<1x128xf32, #tpu.memory_space<vmem>>, %arg7: memref<1x128xf32, #tpu.memory_space<vmem>>, %arg8: memref<3x128xf32, #tpu.memory_space<vmem>>, %arg9: memref<1x128xf32, #tpu.memory_space<vmem>>, %arg10: memref<1x128xf32, #tpu.memory_space<vmem>>, %arg11: memref<1x128xf32, #tpu.memory_space<vmem>>, %arg12: memref<128x128xbf16, #tpu.memory_space<vmem>>, %arg13: memref<1x128xf32, #tpu.memory_space<vmem>>, %arg14: memref<1x1x16x128xf32, #tpu.memory_space<vmem>>) attributes {dimension_semantics = [#tpu.dimension_semantics<parallel>, #tpu.dimension_semantics<parallel>], iteration_bounds = array<i64: 2, 3>, scalar_prefetch = 0 : i64, scratch_operands = 0 : i64, tpu.core_type = #tpu.core_type<tc>, window_params = [{transform_indices = @transform_0, window_bounds = array<i64: 1, 1, 20, 128>}, {transform_indices = @transform_1, window_bounds = array<i64: 2>}, {pipeline_mode = #tpu.pipeline_mode<synchronous>, transform_indices = @transform_2, window_bounds = array<i64: 128, 128>}, {pipeline_mode = #tpu.pipeline_mode<synchronous>, transform_indices = @transform_3, window_bounds = array<i64: 1, 128>}, {pipeline_mode = #tpu.pipeline_mode<synchronous>, transform_indices = @transform_4, window_bounds = array<i64: 1, 128>}, {pipeline_mode = #tpu.pipeline_mode<synchronous>, transform_indices = @transform_5, window_bounds = array<i64: 1, 128>}, {pipeline_mode = #tpu.pipeline_mode<synchronous>, transform_indices = @transform_6, window_bounds = array<i64: 3, 128>}, {pipeline_mode = #tpu.pipeline_mode<synchronous>, transform_indices = @transform_7, window_bounds = array<i64: 1, 128>}, {pipeline_mode = #tpu.pipeline_mode<synchronous>, transform_indices = @transform_8, window_bounds = array<i64: 1, 128>}, {pipeline_mode = #tpu.pipeline_mode<synchronous>, transform_indices = @transform_9, window_bounds = array<i64: 1, 128>}, {pipeline_mode = #tpu.pipeline_mode<synchronous>, transform_indices = @transform_10, window_bounds = array<i64: 128, 128>}, {pipeline_mode = #tpu.pipeline_mode<synchronous>, transform_indices = @transform_11, window_bounds = array<i64: 1, 128>}, {transform_indices = @transform_12, window_bounds = array<i64: 1, 1, 16, 128>}]} {
    %c0 = arith.constant 0 : index
    %0 = memref.load %arg3[%c0] : memref<2xf32, #tpu.memory_space<smem>>
    %c1 = arith.constant 1 : index
    %1 = memref.load %arg3[%c1] : memref<2xf32, #tpu.memory_space<smem>>
    %c0_0 = arith.constant 0 : index
    %c0_1 = arith.constant 0 : index
    %c0_2 = arith.constant 0 : index
    %c0_3 = arith.constant 0 : index
    %2 = vector.load %arg2[%c0_0, %c0_1, %c0_2, %c0_3] : memref<1x1x20x128xf32, #tpu.memory_space<vmem>>, vector<1x1x20x128xf32>
    %3 = vector.shape_cast %2 : vector<1x1x20x128xf32> to vector<20x128xf32>
    %4 = arith.truncf %3 : vector<20x128xf32> to vector<20x128xbf16>
    %c0_4 = arith.constant 0 : index
    %c0_5 = arith.constant 0 : index
    %5 = vector.load %arg4[%c0_4, %c0_5] : memref<128x128xbf16, #tpu.memory_space<vmem>>, vector<128x128xbf16>
    %cst = arith.constant dense<0.000000e+00> : vector<20x128xf32>
    %6 = tpu.matmul %4, %5, %cst {dimension_numbers = #tpu.dot_dimension_numbers<[1], [0], [0], [1], [0, 0, 1, 1], [], []>} : vector<20x128xbf16>, vector<128x128xbf16>, vector<20x128xf32> -> vector<20x128xf32>
    %c0_6 = arith.constant 0 : index
    %c0_7 = arith.constant 0 : index
    %7 = vector.load %arg5[%c0_6, %c0_7] : memref<1x128xf32, #tpu.memory_space<vmem>>, vector<1x128xf32>
    %8 = vector.broadcast %7 : vector<1x128xf32> to vector<20x128xf32>
    %9 = arith.addf %6, %8 : vector<20x128xf32>
    %cst_8 = arith.constant 0.000000e+00 : f32
    %10 = vector.broadcast %cst_8 : f32 to vector<20x128xf32>
    %11 = arith.cmpf oge, %9, %10 : vector<20x128xf32>
    %12 = vector.broadcast %0 : f32 to vector<20x128xf32>
    %13 = arith.mulf %9, %12 : vector<20x128xf32>
    %14 = arith.select %11, %9, %13 : vector<20x128xi1>, vector<20x128xf32>
    %cst_9 = arith.constant dense<0.000000e+00> : vector<20xf32>
    %15 = vector.multi_reduction <add>, %14, %cst_9 [1] : vector<20x128xf32> to vector<20xf32>
    %16 = vector.shape_cast %15 : vector<20xf32> to vector<20x1xf32>
    %17 = arith.mulf %14, %14 : vector<20x128xf32>
    %cst_10 = arith.constant dense<0.000000e+00> : vector<20xf32>
    %18 = vector.multi_reduction <add>, %17, %cst_10 [1] : vector<20x128xf32> to vector<20xf32>
    %19 = vector.shape_cast %18 : vector<20xf32> to vector<20x1xf32>
    %cst_11 = arith.constant 7.812500e-03 : f32
    %20 = vector.broadcast %cst_11 : f32 to vector<20x1xf32>
    %21 = arith.mulf %16, %20 : vector<20x1xf32>
    %cst_12 = arith.constant 7.812500e-03 : f32
    %22 = vector.broadcast %cst_12 : f32 to vector<20x1xf32>
    %23 = arith.mulf %19, %22 : vector<20x1xf32>
    %24 = arith.mulf %21, %21 : vector<20x1xf32>
    %25 = arith.subf %23, %24 : vector<20x1xf32>
    %cst_13 = arith.constant 0.000000e+00 : f32
    %26 = vector.broadcast %cst_13 : f32 to vector<20x1xf32>
    %27 = arith.maximumf %25, %26 : vector<20x1xf32>
    %28 = vector.broadcast %21 : vector<20x1xf32> to vector<20x128xf32>
    %29 = arith.subf %14, %28 : vector<20x128xf32>
    %cst_14 = arith.constant 9.99999974E-6 : f32
    %30 = vector.broadcast %cst_14 : f32 to vector<20x1xf32>
    %31 = arith.addf %27, %30 : vector<20x1xf32>
    %32 = math.rsqrt %31 : vector<20x1xf32>
    %33 = vector.broadcast %32 : vector<20x1xf32> to vector<20x128xf32>
    %34 = arith.mulf %29, %33 : vector<20x128xf32>
    %c0_15 = arith.constant 0 : index
    %c0_16 = arith.constant 0 : index
    %35 = vector.load %arg6[%c0_15, %c0_16] : memref<1x128xf32, #tpu.memory_space<vmem>>, vector<1x128xf32>
    %36 = vector.broadcast %35 : vector<1x128xf32> to vector<20x128xf32>
    %37 = arith.mulf %34, %36 : vector<20x128xf32>
    %c0_17 = arith.constant 0 : index
    %c0_18 = arith.constant 0 : index
    %38 = vector.load %arg7[%c0_17, %c0_18] : memref<1x128xf32, #tpu.memory_space<vmem>>, vector<1x128xf32>
    %39 = vector.broadcast %38 : vector<1x128xf32> to vector<20x128xf32>
    %40 = arith.addf %37, %39 : vector<20x128xf32>
    %41 = tpu.iota {dimensions = array<i32: 0>} : vector<20x1xi32>
    %c16_i32 = arith.constant 16 : i32
    %42 = arith.muli %arg1, %c16_i32 : i32
    %43 = vector.broadcast %42 : i32 to vector<20x1xi32>
    %44 = arith.addi %41, %43 : vector<20x1xi32>
    %c2_i32 = arith.constant 2 : i32
    %45 = vector.broadcast %c2_i32 : i32 to vector<20x1xi32>
    %46 = arith.cmpi sge, %44, %45 : vector<20x1xi32>
    %c42_i32 = arith.constant 42 : i32
    %47 = vector.broadcast %c42_i32 : i32 to vector<20x1xi32>
    %48 = arith.cmpi slt, %44, %47 : vector<20x1xi32>
    %49 = arith.andi %46, %48 : vector<20x1xi1>
    %cst_19 = arith.constant 0.000000e+00 : f32
    %50 = vector.shape_cast %49 : vector<20x1xi1> to vector<20x1xi1>
    %51 = vector.broadcast %50 : vector<20x1xi1> to vector<20x128xi1>
    %52 = vector.broadcast %cst_19 : f32 to vector<20x128xf32>
    %53 = arith.select %51, %40, %52 : vector<20x128xi1>, vector<20x128xf32>
    %c0_20 = arith.constant 0 : index
    %c0_21 = arith.constant 0 : index
    %54 = vector.load %arg9[%c0_20, %c0_21] : memref<1x128xf32, #tpu.memory_space<vmem>>, vector<1x128xf32>
    %c0_22 = arith.constant 0 : index
    %c0_23 = arith.constant 0 : index
    %55 = vector.load %arg8[%c0_22, %c0_23] : memref<3x128xf32, #tpu.memory_space<vmem>>, vector<1x128xf32>
    %56 = vector.extract_strided_slice %53 {offsets = [0, 0], sizes = [16, 128], strides = [1, 1]} : vector<20x128xf32> to vector<16x128xf32>
    %57 = vector.broadcast %55 : vector<1x128xf32> to vector<16x128xf32>
    %58 = arith.mulf %57, %56 : vector<16x128xf32>
    %59 = vector.broadcast %54 : vector<1x128xf32> to vector<16x128xf32>
    %60 = arith.addf %59, %58 : vector<16x128xf32>
    %c1_24 = arith.constant 1 : index
    %c0_25 = arith.constant 0 : index
    %61 = vector.load %arg8[%c1_24, %c0_25] : memref<3x128xf32, #tpu.memory_space<vmem>>, vector<1x128xf32>
    %62 = vector.extract_strided_slice %53 {offsets = [2, 0], sizes = [16, 128], strides = [1, 1]} : vector<20x128xf32> to vector<16x128xf32>
    %63 = vector.broadcast %61 : vector<1x128xf32> to vector<16x128xf32>
    %64 = arith.mulf %63, %62 : vector<16x128xf32>
    %65 = arith.addf %60, %64 : vector<16x128xf32>
    %c2 = arith.constant 2 : index
    %c0_26 = arith.constant 0 : index
    %66 = vector.load %arg8[%c2, %c0_26] : memref<3x128xf32, #tpu.memory_space<vmem>>, vector<1x128xf32>
    %67 = vector.extract_strided_slice %53 {offsets = [4, 0], sizes = [16, 128], strides = [1, 1]} : vector<20x128xf32> to vector<16x128xf32>
    %68 = vector.broadcast %66 : vector<1x128xf32> to vector<16x128xf32>
    %69 = arith.mulf %68, %67 : vector<16x128xf32>
    %70 = arith.addf %65, %69 : vector<16x128xf32>
    %cst_27 = arith.constant 0.000000e+00 : f32
    %71 = vector.broadcast %cst_27 : f32 to vector<16x128xf32>
    %72 = arith.cmpf oge, %70, %71 : vector<16x128xf32>
    %73 = vector.broadcast %1 : f32 to vector<16x128xf32>
    %74 = arith.mulf %70, %73 : vector<16x128xf32>
    %75 = arith.select %72, %70, %74 : vector<16x128xi1>, vector<16x128xf32>
    %cst_28 = arith.constant dense<0.000000e+00> : vector<16xf32>
    %76 = vector.multi_reduction <add>, %75, %cst_28 [1] : vector<16x128xf32> to vector<16xf32>
    %77 = vector.shape_cast %76 : vector<16xf32> to vector<16x1xf32>
    %78 = arith.mulf %75, %75 : vector<16x128xf32>
    %cst_29 = arith.constant dense<0.000000e+00> : vector<16xf32>
    %79 = vector.multi_reduction <add>, %78, %cst_29 [1] : vector<16x128xf32> to vector<16xf32>
    %80 = vector.shape_cast %79 : vector<16xf32> to vector<16x1xf32>
    %cst_30 = arith.constant 7.812500e-03 : f32
    %81 = vector.broadcast %cst_30 : f32 to vector<16x1xf32>
    %82 = arith.mulf %77, %81 : vector<16x1xf32>
    %cst_31 = arith.constant 7.812500e-03 : f32
    %83 = vector.broadcast %cst_31 : f32 to vector<16x1xf32>
    %84 = arith.mulf %80, %83 : vector<16x1xf32>
    %85 = arith.mulf %82, %82 : vector<16x1xf32>
    %86 = arith.subf %84, %85 : vector<16x1xf32>
    %cst_32 = arith.constant 0.000000e+00 : f32
    %87 = vector.broadcast %cst_32 : f32 to vector<16x1xf32>
    %88 = arith.maximumf %86, %87 : vector<16x1xf32>
    %89 = vector.broadcast %82 : vector<16x1xf32> to vector<16x128xf32>
    %90 = arith.subf %75, %89 : vector<16x128xf32>
    %cst_33 = arith.constant 9.99999974E-6 : f32
    %91 = vector.broadcast %cst_33 : f32 to vector<16x1xf32>
    %92 = arith.addf %88, %91 : vector<16x1xf32>
    %93 = math.rsqrt %92 : vector<16x1xf32>
    %94 = vector.broadcast %93 : vector<16x1xf32> to vector<16x128xf32>
    %95 = arith.mulf %90, %94 : vector<16x128xf32>
    %c0_34 = arith.constant 0 : index
    %c0_35 = arith.constant 0 : index
    %96 = vector.load %arg10[%c0_34, %c0_35] : memref<1x128xf32, #tpu.memory_space<vmem>>, vector<1x128xf32>
    %97 = vector.broadcast %96 : vector<1x128xf32> to vector<16x128xf32>
    %98 = arith.mulf %95, %97 : vector<16x128xf32>
    %c0_36 = arith.constant 0 : index
    %c0_37 = arith.constant 0 : index
    %99 = vector.load %arg11[%c0_36, %c0_37] : memref<1x128xf32, #tpu.memory_space<vmem>>, vector<1x128xf32>
    %100 = vector.broadcast %99 : vector<1x128xf32> to vector<16x128xf32>
    %101 = arith.addf %98, %100 : vector<16x128xf32>
    %102 = arith.truncf %101 : vector<16x128xf32> to vector<16x128xbf16>
    %c0_38 = arith.constant 0 : index
    %c0_39 = arith.constant 0 : index
    %103 = vector.load %arg12[%c0_38, %c0_39] : memref<128x128xbf16, #tpu.memory_space<vmem>>, vector<128x128xbf16>
    %cst_40 = arith.constant dense<0.000000e+00> : vector<16x128xf32>
    %104 = tpu.matmul %102, %103, %cst_40 {dimension_numbers = #tpu.dot_dimension_numbers<[1], [0], [0], [1], [0, 0, 1, 1], [], []>} : vector<16x128xbf16>, vector<128x128xbf16>, vector<16x128xf32> -> vector<16x128xf32>
    %c0_41 = arith.constant 0 : index
    %c0_42 = arith.constant 0 : index
    %105 = vector.load %arg13[%c0_41, %c0_42] : memref<1x128xf32, #tpu.memory_space<vmem>>, vector<1x128xf32>
    %106 = vector.broadcast %105 : vector<1x128xf32> to vector<16x128xf32>
    %107 = arith.addf %104, %106 : vector<16x128xf32>
    %c0_43 = arith.constant 0 : index
    %c0_44 = arith.constant 0 : index
    %c2_45 = arith.constant 2 : index
    %c0_46 = arith.constant 0 : index
    %108 = vector.load %arg2[%c0_43, %c0_44, %c2_45, %c0_46] : memref<1x1x20x128xf32, #tpu.memory_space<vmem>>, vector<1x1x16x128xf32>
    %109 = vector.shape_cast %108 : vector<1x1x16x128xf32> to vector<16x128xf32>
    %110 = arith.addf %109, %107 : vector<16x128xf32>
    %c0_47 = arith.constant 0 : index
    %c0_48 = arith.constant 0 : index
    %c0_49 = arith.constant 0 : index
    %c0_50 = arith.constant 0 : index
    %111 = vector.load %arg14[%c0_47, %c0_48, %c0_49, %c0_50] : memref<1x1x16x128xf32, #tpu.memory_space<vmem>>, vector<1x1x16x128xf32>
    %112 = vector.shape_cast %111 : vector<1x1x16x128xf32> to vector<16x128xf32>
    %113 = vector.shape_cast %110 : vector<16x128xf32> to vector<1x1x16x128xf32>
    tpu.vector_store %arg14[%c0_47, %c0_48, %c0_49, %c0_50], %113 {strides = array<i32>} : memref<1x1x16x128xf32, #tpu.memory_space<vmem>>, vector<1x1x16x128xf32>,
    return
  }
  func.func @transform_0(%arg0: i32, %arg1: i32) -> (i32, i32, i32, i32) {
    %c0_i32 = arith.constant 0 : i32
    %c0_i32_0 = arith.constant 0 : i32
    %c0_i32_1 = arith.constant 0 : i32
    return %arg0, %arg1, %c0_i32, %c0_i32_0 : i32, i32, i32, i32
  }
  func.func @transform_1(%arg0: i32, %arg1: i32) -> i32 {
    %c0_i32 = arith.constant 0 : i32
    %c0_i32_0 = arith.constant 0 : i32
    return %c0_i32 : i32
  }
  func.func @transform_2(%arg0: i32, %arg1: i32) -> (i32, i32) {
    %c0_i32 = arith.constant 0 : i32
    %c0_i32_0 = arith.constant 0 : i32
    %c0_i32_1 = arith.constant 0 : i32
    return %c0_i32, %c0_i32_0 : i32, i32
  }
  func.func @transform_3(%arg0: i32, %arg1: i32) -> (i32, i32) {
    %c0_i32 = arith.constant 0 : i32
    %c0_i32_0 = arith.constant 0 : i32
    %c0_i32_1 = arith.constant 0 : i32
    return %c0_i32, %c0_i32_0 : i32, i32
  }
  func.func @transform_4(%arg0: i32, %arg1: i32) -> (i32, i32) {
    %c0_i32 = arith.constant 0 : i32
    %c0_i32_0 = arith.constant 0 : i32
    %c0_i32_1 = arith.constant 0 : i32
    return %c0_i32, %c0_i32_0 : i32, i32
  }
  func.func @transform_5(%arg0: i32, %arg1: i32) -> (i32, i32) {
    %c0_i32 = arith.constant 0 : i32
    %c0_i32_0 = arith.constant 0 : i32
    %c0_i32_1 = arith.constant 0 : i32
    return %c0_i32, %c0_i32_0 : i32, i32
  }
  func.func @transform_6(%arg0: i32, %arg1: i32) -> (i32, i32) {
    %c0_i32 = arith.constant 0 : i32
    %c0_i32_0 = arith.constant 0 : i32
    %c0_i32_1 = arith.constant 0 : i32
    return %c0_i32, %c0_i32_0 : i32, i32
  }
  func.func @transform_7(%arg0: i32, %arg1: i32) -> (i32, i32) {
    %c0_i32 = arith.constant 0 : i32
    %c0_i32_0 = arith.constant 0 : i32
    %c0_i32_1 = arith.constant 0 : i32
    return %c0_i32, %c0_i32_0 : i32, i32
  }
  func.func @transform_8(%arg0: i32, %arg1: i32) -> (i32, i32) {
    %c0_i32 = arith.constant 0 : i32
    %c0_i32_0 = arith.constant 0 : i32
    %c0_i32_1 = arith.constant 0 : i32
    return %c0_i32, %c0_i32_0 : i32, i32
  }
  func.func @transform_9(%arg0: i32, %arg1: i32) -> (i32, i32) {
    %c0_i32 = arith.constant 0 : i32
    %c0_i32_0 = arith.constant 0 : i32
    %c0_i32_1 = arith.constant 0 : i32
    return %c0_i32, %c0_i32_0 : i32, i32
  }
  func.func @transform_10(%arg0: i32, %arg1: i32) -> (i32, i32) {
    %c0_i32 = arith.constant 0 : i32
    %c0_i32_0 = arith.constant 0 : i32
    %c0_i32_1 = arith.constant 0 : i32
    return %c0_i32, %c0_i32_0 : i32, i32
  }
  func.func @transform_11(%arg0: i32, %arg1: i32) -> (i32, i32) {
    %c0_i32 = arith.constant 0 : i32
    %c0_i32_0 = arith.constant 0 : i32
    %c0_i32_1 = arith.constant 0 : i32
    return %c0_i32, %c0_i32_0 : i32, i32
  }
  func.func @transform_12(%arg0: i32, %arg1: i32) -> (i32, i32, i32, i32) {
    %c0_i32 = arith.constant 0 : i32
    %c0_i32_0 = arith.constant 0 : i32
    %c0_i32_1 = arith.constant 0 : i32
    return %arg0, %arg1, %c0_i32, %c0_i32_0 : i32, i32, i32, i32
  }
}

</mosaic_0001>

<llo_original>
// kernel: tpu_custom_call.1
$region0: #{tpu_custom_call.1}
  #allocation0 [shape = 'u32[]', space=smem, size = 0x4, offset = 0x4, fixed_abs, tag = 'smem constant byte address 0x4 - core index']
  #allocation1 [shape = 'u32[72,128]{1,0:T(1,128)}', space=vmem, size = 0x9000, scoped, tag = 'internal scratch']
  %s0 = inlined_call_operand.vmem [shape: f32[2,3,20,128], index: 0, kind: input, shape index: {}]
  %s1 = inlined_call_operand.vmem [shape: f32[2], index: 1, kind: input, shape index: {}]
  %s2 = inlined_call_operand.vmem [shape: bf16[128,128], index: 2, kind: input, shape index: {}]
  %s3 = inlined_call_operand.vmem [shape: f32[1,128], index: 3, kind: input, shape index: {}]
  %s4 = inlined_call_operand.vmem [shape: f32[1,128], index: 4, kind: input, shape index: {}]
  %s5 = inlined_call_operand.vmem [shape: f32[1,128], index: 5, kind: input, shape index: {}]
  %s6 = inlined_call_operand.vmem [shape: f32[3,128], index: 6, kind: input, shape index: {}]
  %s7 = inlined_call_operand.vmem [shape: f32[1,128], index: 7, kind: input, shape index: {}]
  %s8 = inlined_call_operand.vmem [shape: f32[1,128], index: 8, kind: input, shape index: {}]
  %s9 = inlined_call_operand.vmem [shape: f32[1,128], index: 9, kind: input, shape index: {}]
  %s10 = inlined_call_operand.vmem [shape: bf16[128,128], index: 10, kind: input, shape index: {}]
  %s11 = inlined_call_operand.vmem [shape: f32[1,128], index: 11, kind: input, shape index: {}]
  %s12 = inlined_call_operand.hbm [shape: f32[2,3,16,128], index: 12, kind: output, shape index: {}]
  %s13 = sld [smem:[#allocation0]]
  $region85: #{tpu_custom_call.1} parent=0
    _
  %s15 = ssub.s32 1, %s13
  %s16 = scalar_select 0, %s15, %s13
  $region1: #{tpu_custom_call.1} parent=0
    #allocation2 [shape = 'u8[512]{0}', space=smem, size = 0x200, scoped, tag = 'input window, operand 1, single buffered']
    #allocation3 [shape = 's32[2]{0}', space=sflag, size = 0x8, scoped, tag = 'scoped memory for tpu_custom_call.1']
    #allocation4 [shape = 's32[2]{0}', space=sflag, size = 0x8, scoped, tag = 'scoped memory for tpu_custom_call.1']
    #allocation5 [shape = 'u8[16384]{0}', space=vmem, size = 0x4000, scoped, tag = 'output window, operand 0']
    %17 = vsyncpa [#allocation4], 0
    %18 = vsyncpa [#allocation3], 0
    %s19 = scalar_lea.sflag [#allocation3], 1
    %20 = vsyncpa %s19, 0
    loop: start=0, step=1, limit=8
    $region2: #{tpu_custom_call.1} parent=1 // loop_pre_header
      _
    $region3: #{tpu_custom_call.1} parent=1 // loop_header
      %s22 = sphi 0, %s26
      %p23 = scmp.ge.s32.totalorder %s22, 8
      %s29 = sphi 0, %s41
      %s30 = sphi 0, %s37
      %s31 = sphi 0, %s29
      %s32 = sphi 0, %s30
      %s33 = sphi 0, %s31
      %s34 = sphi 0, %s32
      %s46 = sphi 0, %s48
      %s49 = sphi 0, %s46
      %s50 = sphi 0, %s49
      %s66 = sphi 0, %s50
      %s70 = sphi 0, %s70
      %s72 = sphi 0, %s70
      %s73 = sphi 0, %s72
      %s87 = sphi 0, %s73
      %s91 = sphi 0, %s91
      %s93 = sphi 0, %s91
      %s94 = sphi 0, %s93
      %s108 = sphi 0, %s94
      %s112 = sphi 0, %s112
      %s114 = sphi 0, %s112
      %s115 = sphi 0, %s114
      %s129 = sphi 0, %s115
      %s133 = sphi 0, %s133
      %s135 = sphi 0, %s133
      %s136 = sphi 0, %s135
      %s150 = sphi 0, %s136
      %s154 = sphi 0, %s154
      %s156 = sphi 0, %s154
      %s157 = sphi 0, %s156
      %s171 = sphi 0, %s157
      %s175 = sphi 0, %s175
      %s177 = sphi 0, %s175
      %s178 = sphi 0, %s177
      %s192 = sphi 0, %s178
      %s196 = sphi 0, %s196
      %s198 = sphi 0, %s196
      %s199 = sphi 0, %s198
      %s213 = sphi 0, %s199
      %s217 = sphi 0, %s217
      %s219 = sphi 0, %s217
      %s220 = sphi 0, %s219
      %s234 = sphi 0, %s220
      %s238 = sphi 0, %s238
      %s240 = sphi 0, %s238
      %s241 = sphi 0, %s240
      %s255 = sphi 0, %s241
      %s259 = sphi 0, %s259
      %s261 = sphi 0, %s259
      %s262 = sphi 0, %s261
      %s276 = sphi 0, %s262
      %s280 = sphi 0, %s280
      %s282 = sphi 0, %s280
      %s283 = sphi 0, %s282
      %s297 = sphi 0, %s283
      %s305 = sphi 0, %s307
      %s308 = sphi 0, %s305
      %s309 = sphi 0, %s308
      %s325 = sphi 0, %s309
    $region4: #{tpu_custom_call.1} parent=1 // loop_header_branch
      %25 = sbr.rel (%p23) target = $region8
    $region5: #{tpu_custom_call.1} parent=1 // loop_body
      %s27 = ssub.s32 %s22, 1
      %s28 = ssub.s32 %s22, 2
      %s35 = sadd.s32 1, %s30
      %p36 = scmp.ge.s32.totalorder %s35, 3
      %s37 = scalar_select %p36, 0, %s35
      %s38 = sadd.s32 1, %s29
      %s39 = scalar_select %p36, %s38, %s29
      %p40 = scmp.ge.s32.totalorder %s39, 2
      %s41 = scalar_select %p40, 0, %s39
      %s42 = ssub.s32 %s29, %s41
      %s43 = ssub.s32 %s30, %s37
      %s44 = sor.u32 %s42, %s43
      %p45 = scmp.eq.s32.totalorder %s44, 0
      %s47 = sadd.s32 %s46, 1
      %s48 = scalar_select %p45, %s46, %s47
      %p51 = pneg %p45
      %p52 = scmp.eq.s32.totalorder %s22, 5
      %p53 = por %p51, %p52
      %p54 = scmp.ne.s32.totalorder %s46, %s49
      %p55 = scmp.eq.s32.totalorder %s22, 0
      %p56 = por %p54, %p55
      %p57 = scmp.ne.s32.totalorder %s46, %s49
      %p58 = scmp.eq.s32.totalorder %s27, 5
      %p59 = por %p57, %p58
      %p60 = scmp.ne.s32.totalorder %s49, %s50
      %p61 = scmp.eq.s32.totalorder %s27, 0
      %p62 = por %p60, %p61
      %p63 = scmp.ne.s32.totalorder %s49, %s50
      %p64 = scmp.eq.s32.totalorder %s28, 5
      %p65 = por %p63, %p64
      %p67 = scmp.ne.s32.totalorder %s50, %s66
      %p68 = scmp.eq.s32.totalorder %s28, 0
      %p69 = por %p67, %p68
      %s71 = sadd.s32 %s70, 1
      %p74 = scmp.eq.s32.totalorder %s22, 5
      %p75 = scmp.ne.s32.totalorder %s70, %s72
      %p76 = scmp.eq.s32.totalorder %s22, 0
      %p77 = por %p75, %p76
      %p78 = scmp.ne.s32.totalorder %s70, %s72
      %p79 = scmp.eq.s32.totalorder %s27, 5
      %p80 = por %p78, %p79
      %p81 = scmp.ne.s32.totalorder %s72, %s73
      %p82 = scmp.eq.s32.totalorder %s27, 0
      %p83 = por %p81, %p82
      %p84 = scmp.ne.s32.totalorder %s72, %s73
      %p85 = scmp.eq.s32.totalorder %s28, 5
      %p86 = por %p84, %p85
      %p88 = scmp.ne.s32.totalorder %s73, %s87
      %p89 = scmp.eq.s32.totalorder %s28, 0
      %p90 = por %p88, %p89
      %s92 = sadd.s32 %s91, 1
      %p95 = scmp.eq.s32.totalorder %s22, 5
      %p96 = scmp.ne.s32.totalorder %s91, %s93
      %p97 = scmp.eq.s32.totalorder %s22, 0
      %p98 = por %p96, %p97
      %p99 = scmp.ne.s32.totalorder %s91, %s93
      %p100 = scmp.eq.s32.totalorder %s27, 5
      %p101 = por %p99, %p100
      %p102 = scmp.ne.s32.totalorder %s93, %s94
      %p103 = scmp.eq.s32.totalorder %s27, 0
      %p104 = por %p102, %p103
      %p105 = scmp.ne.s32.totalorder %s93, %s94
      %p106 = scmp.eq.s32.totalorder %s28, 5
      %p107 = por %p105, %p106
      %p109 = scmp.ne.s32.totalorder %s94, %s108
      %p110 = scmp.eq.s32.totalorder %s28, 0
      %p111 = por %p109, %p110
      %s113 = sadd.s32 %s112, 1
      %p116 = scmp.eq.s32.totalorder %s22, 5
      %p117 = scmp.ne.s32.totalorder %s112, %s114
      %p118 = scmp.eq.s32.totalorder %s22, 0
      %p119 = por %p117, %p118
      %p120 = scmp.ne.s32.totalorder %s112, %s114
      %p121 = scmp.eq.s32.totalorder %s27, 5
      %p122 = por %p120, %p121
      %p123 = scmp.ne.s32.totalorder %s114, %s115
      %p124 = scmp.eq.s32.totalorder %s27, 0
      %p125 = por %p123, %p124
      %p126 = scmp.ne.s32.totalorder %s114, %s115
      %p127 = scmp.eq.s32.totalorder %s28, 5
      %p128 = por %p126, %p127
      %p130 = scmp.ne.s32.totalorder %s115, %s129
      %p131 = scmp.eq.s32.totalorder %s28, 0
      %p132 = por %p130, %p131
      %s134 = sadd.s32 %s133, 1
      %p137 = scmp.eq.s32.totalorder %s22, 5
      %p138 = scmp.ne.s32.totalorder %s133, %s135
      %p139 = scmp.eq.s32.totalorder %s22, 0
      %p140 = por %p138, %p139
      %p141 = scmp.ne.s32.totalorder %s133, %s135
      %p142 = scmp.eq.s32.totalorder %s27, 5
      %p143 = por %p141, %p142
      %p144 = scmp.ne.s32.totalorder %s135, %s136
      %p145 = scmp.eq.s32.totalorder %s27, 0
      %p146 = por %p144, %p145
      %p147 = scmp.ne.s32.totalorder %s135, %s136
      %p148 = scmp.eq.s32.totalorder %s28, 5
      %p149 = por %p147, %p148
      %p151 = scmp.ne.s32.totalorder %s136, %s150
      %p152 = scmp.eq.s32.totalorder %s28, 0
      %p153 = por %p151, %p152
      %s155 = sadd.s32 %s154, 1
      %p158 = scmp.eq.s32.totalorder %s22, 5
      %p159 = scmp.ne.s32.totalorder %s154, %s156
      %p160 = scmp.eq.s32.totalorder %s22, 0
      %p161 = por %p159, %p160
      %p162 = scmp.ne.s32.totalorder %s154, %s156
      %p163 = scmp.eq.s32.totalorder %s27, 5
      %p164 = por %p162, %p163
      %p165 = scmp.ne.s32.totalorder %s156, %s157
      %p166 = scmp.eq.s32.totalorder %s27, 0
      %p167 = por %p165, %p166
      %p168 = scmp.ne.s32.totalorder %s156, %s157
      %p169 = scmp.eq.s32.totalorder %s28, 5
      %p170 = por %p168, %p169
      %p172 = scmp.ne.s32.totalorder %s157, %s171
      %p173 = scmp.eq.s32.totalorder %s28, 0
      %p174 = por %p172, %p173
      %s176 = sadd.s32 %s175, 1
      %p179 = scmp.eq.s32.totalorder %s22, 5
      %p180 = scmp.ne.s32.totalorder %s175, %s177
      %p181 = scmp.eq.s32.totalorder %s22, 0
      %p182 = por %p180, %p181
      %p183 = scmp.ne.s32.totalorder %s175, %s177
      %p184 = scmp.eq.s32.totalorder %s27, 5
      %p185 = por %p183, %p184
      %p186 = scmp.ne.s32.totalorder %s177, %s178
      %p187 = scmp.eq.s32.totalorder %s27, 0
      %p188 = por %p186, %p187
      %p189 = scmp.ne.s32.totalorder %s177, %s178
      %p190 = scmp.eq.s32.totalorder %s28, 5
      %p191 = por %p189, %p190
      %p193 = scmp.ne.s32.totalorder %s178, %s192
      %p194 = scmp.eq.s32.totalorder %s28, 0
      %p195 = por %p193, %p194
      %s197 = sadd.s32 %s196, 1
      %p200 = scmp.eq.s32.totalorder %s22, 5
      %p201 = scmp.ne.s32.totalorder %s196, %s198
      %p202 = scmp.eq.s32.totalorder %s22, 0
      %p203 = por %p201, %p202
      %p204 = scmp.ne.s32.totalorder %s196, %s198
      %p205 = scmp.eq.s32.totalorder %s27, 5
      %p206 = por %p204, %p205
      %p207 = scmp.ne.s32.totalorder %s198, %s199
      %p208 = scmp.eq.s32.totalorder %s27, 0
      %p209 = por %p207, %p208
      %p210 = scmp.ne.s32.totalorder %s198, %s199
      %p211 = scmp.eq.s32.totalorder %s28, 5
      %p212 = por %p210, %p211
      %p214 = scmp.ne.s32.totalorder %s199, %s213
      %p215 = scmp.eq.s32.totalorder %s28, 0
      %p216 = por %p214, %p215
      %s218 = sadd.s32 %s217, 1
      %p221 = scmp.eq.s32.totalorder %s22, 5
      %p222 = scmp.ne.s32.totalorder %s217, %s219
      %p223 = scmp.eq.s32.totalorder %s22, 0
      %p224 = por %p222, %p223
      %p225 = scmp.ne.s32.totalorder %s217, %s219
      %p226 = scmp.eq.s32.totalorder %s27, 5
      %p227 = por %p225, %p226
      %p228 = scmp.ne.s32.totalorder %s219, %s220
      %p229 = scmp.eq.s32.totalorder %s27, 0
      %p230 = por %p228, %p229
      %p231 = scmp.ne.s32.totalorder %s219, %s220
      %p232 = scmp.eq.s32.totalorder %s28, 5
      %p233 = por %p231, %p232
      %p235 = scmp.ne.s32.totalorder %s220, %s234
      %p236 = scmp.eq.s32.totalorder %s28, 0
      %p237 = por %p235, %p236
      %s239 = sadd.s32 %s238, 1
      %p242 = scmp.eq.s32.totalorder %s22, 5
      %p243 = scmp.ne.s32.totalorder %s238, %s240
      %p244 = scmp.eq.s32.totalorder %s22, 0
      %p245 = por %p243, %p244
      %p246 = scmp.ne.s32.totalorder %s238, %s240
      %p247 = scmp.eq.s32.totalorder %s27, 5
      %p248 = por %p246, %p247
      %p249 = scmp.ne.s32.totalorder %s240, %s241
      %p250 = scmp.eq.s32.totalorder %s27, 0
      %p251 = por %p249, %p250
      %p252 = scmp.ne.s32.totalorder %s240, %s241
      %p253 = scmp.eq.s32.totalorder %s28, 5
      %p254 = por %p252, %p253
      %p256 = scmp.ne.s32.totalorder %s241, %s255
      %p257 = scmp.eq.s32.totalorder %s28, 0
      %p258 = por %p256, %p257
      %s260 = sadd.s32 %s259, 1
      %p263 = scmp.eq.s32.totalorder %s22, 5
      %p264 = scmp.ne.s32.totalorder %s259, %s261
      %p265 = scmp.eq.s32.totalorder %s22, 0
      %p266 = por %p264, %p265
      %p267 = scmp.ne.s32.totalorder %s259, %s261
      %p268 = scmp.eq.s32.totalorder %s27, 5
      %p269 = por %p267, %p268
      %p270 = scmp.ne.s32.totalorder %s261, %s262
      %p271 = scmp.eq.s32.totalorder %s27, 0
      %p272 = por %p270, %p271
      %p273 = scmp.ne.s32.totalorder %s261, %s262
      %p274 = scmp.eq.s32.totalorder %s28, 5
      %p275 = por %p273, %p274
      %p277 = scmp.ne.s32.totalorder %s262, %s276
      %p278 = scmp.eq.s32.totalorder %s28, 0
      %p279 = por %p277, %p278
      %s281 = sadd.s32 %s280, 1
      %p284 = scmp.eq.s32.totalorder %s22, 5
      %p285 = scmp.ne.s32.totalorder %s280, %s282
      %p286 = scmp.eq.s32.totalorder %s22, 0
      %p287 = por %p285, %p286
      %p288 = scmp.ne.s32.totalorder %s280, %s282
      %p289 = scmp.eq.s32.totalorder %s27, 5
      %p290 = por %p288, %p289
      %p291 = scmp.ne.s32.totalorder %s282, %s283
      %p292 = scmp.eq.s32.totalorder %s27, 0
      %p293 = por %p291, %p292
      %p294 = scmp.ne.s32.totalorder %s282, %s283
      %p295 = scmp.eq.s32.totalorder %s28, 5
      %p296 = por %p294, %p295
      %p298 = scmp.ne.s32.totalorder %s283, %s297
      %p299 = scmp.eq.s32.totalorder %s28, 0
      %p300 = por %p298, %p299
      %s301 = ssub.s32 %s29, %s41
      %s302 = ssub.s32 %s30, %s37
      %s303 = sor.u32 %s301, %s302
      %p304 = scmp.eq.s32.totalorder %s303, 0
      %s306 = sadd.s32 %s305, 1
      %s307 = scalar_select %p304, %s305, %s306
      %p310 = pneg %p304
      %p311 = scmp.eq.s32.totalorder %s22, 5
      %p312 = por %p310, %p311
      %p313 = scmp.ne.s32.totalorder %s305, %s308
      %p314 = scmp.eq.s32.totalorder %s22, 0
      %p315 = por %p313, %p314
      %p316 = scmp.ne.s32.totalorder %s305, %s308
      %p317 = scmp.eq.s32.totalorder %s27, 5
      %p318 = por %p316, %p317
      %p319 = scmp.ne.s32.totalorder %s308, %s309
      %p320 = scmp.eq.s32.totalorder %s27, 0
      %p321 = por %p319, %p320
      %p322 = scmp.ne.s32.totalorder %s308, %s309
      %p323 = scmp.eq.s32.totalorder %s28, 5
      %p324 = por %p322, %p323
      %p326 = scmp.ne.s32.totalorder %s309, %s325
      %p327 = scmp.eq.s32.totalorder %s28, 0
      %p328 = por %p326, %p327
      %p329 = scmp.le.s32.totalorder 1, %s22
      %p330 = scmp.lt.s32.totalorder %s22, 7
      %p331 = pnand %p329, %p330
      %p332 = pneg %p331
      // Predicated region
      $region9: #{tpu_custom_call.1} parent=5 // pred_check
        _
      $region10: #{tpu_custom_call.1} parent=5 // pred_check_branch
        %334 = sbr.rel (%p331) target = $region12
      $region11: #{tpu_custom_call.1} parent=5 // pred_region
        %s335 = ssub.s32 %s22, 1
        // Predicated region
        $region13: #{tpu_custom_call.1} parent=11 // pred_check
          %p336 = pneg %p83
        $region14: #{tpu_custom_call.1} parent=11 // pred_check_branch
          %338 = sbr.rel (%p336) target = $region16
        $region15: #{tpu_custom_call.1} parent=11 // pred_region
          %340 = vsyncadd [#allocation4], 0
          %s342 = sshll.u32 %s1, 4
          %s343 = int_to_ptr.vmem [resolvable:$true] %s342
          %345 = dma.vmem_to_smem %s343, 16, [#allocation2], [#allocation4]
        $region16: #{tpu_custom_call.1} parent=11 // pred_fallthru
          _
        // Predicated region
        $region17: #{tpu_custom_call.1} parent=11 // pred_check
          %p346 = pneg %p104
        $region18: #{tpu_custom_call.1} parent=11 // pred_check_branch
          %348 = sbr.rel (%p346) target = $region20
        $region19: #{tpu_custom_call.1} parent=11 // pred_region
          _
        $region20: #{tpu_custom_call.1} parent=11 // pred_fallthru
          _
        // Predicated region
        $region21: #{tpu_custom_call.1} parent=11 // pred_check
          %p349 = pneg %p125
        $region22: #{tpu_custom_call.1} parent=11 // pred_check_branch
          %351 = sbr.rel (%p349) target = $region24
        $region23: #{tpu_custom_call.1} parent=11 // pred_region
          _
        $region24: #{tpu_custom_call.1} parent=11 // pred_fallthru
          _
        // Predicated region
        $region25: #{tpu_custom_call.1} parent=11 // pred_check
          %p352 = pneg %p146
        $region26: #{tpu_custom_call.1} parent=11 // pred_check_branch
          %354 = sbr.rel (%p352) target = $region28
        $region27: #{tpu_custom_call.1} parent=11 // pred_region
          _
        $region28: #{tpu_custom_call.1} parent=11 // pred_fallthru
          _
        // Predicated region
        $region29: #{tpu_custom_call.1} parent=11 // pred_check
          %p355 = pneg %p167
        $region30: #{tpu_custom_call.1} parent=11 // pred_check_branch
          %357 = sbr.rel (%p355) target = $region32
        $region31: #{tpu_custom_call.1} parent=11 // pred_region
          _
        $region32: #{tpu_custom_call.1} parent=11 // pred_fallthru
          _
        // Predicated region
        $region33: #{tpu_custom_call.1} parent=11 // pred_check
          %p358 = pneg %p188
        $region34: #{tpu_custom_call.1} parent=11 // pred_check_branch
          %360 = sbr.rel (%p358) target = $region36
        $region35: #{tpu_custom_call.1} parent=11 // pred_region
          _
        $region36: #{tpu_custom_call.1} parent=11 // pred_fallthru
          _
        // Predicated region
        $region37: #{tpu_custom_call.1} parent=11 // pred_check
          %p361 = pneg %p209
        $region38: #{tpu_custom_call.1} parent=11 // pred_check_branch
          %363 = sbr.rel (%p361) target = $region40
        $region39: #{tpu_custom_call.1} parent=11 // pred_region
          _
        $region40: #{tpu_custom_call.1} parent=11 // pred_fallthru
          _
        // Predicated region
        $region41: #{tpu_custom_call.1} parent=11 // pred_check
          %p364 = pneg %p230
        $region42: #{tpu_custom_call.1} parent=11 // pred_check_branch
          %366 = sbr.rel (%p364) target = $region44
        $region43: #{tpu_custom_call.1} parent=11 // pred_region
          _
        $region44: #{tpu_custom_call.1} parent=11 // pred_fallthru
          _
        // Predicated region
        $region45: #{tpu_custom_call.1} parent=11 // pred_check
          %p367 = pneg %p251
        $region46: #{tpu_custom_call.1} parent=11 // pred_check_branch
          %369 = sbr.rel (%p367) target = $region48
        $region47: #{tpu_custom_call.1} parent=11 // pred_region
          _
        $region48: #{tpu_custom_call.1} parent=11 // pred_fallthru
          _
        // Predicated region
        $region49: #{tpu_custom_call.1} parent=11 // pred_check
          %p370 = pneg %p272
        $region50: #{tpu_custom_call.1} parent=11 // pred_check_branch
          %372 = sbr.rel (%p370) target = $region52
        $region51: #{tpu_custom_call.1} parent=11 // pred_region
          _
        $region52: #{tpu_custom_call.1} parent=11 // pred_fallthru
          _
        // Predicated region
        $region53: #{tpu_custom_call.1} parent=11 // pred_check
          %p373 = pneg %p293
        $region54: #{tpu_custom_call.1} parent=11 // pred_check_branch
          %375 = sbr.rel (%p373) target = $region56
        $region55: #{tpu_custom_call.1} parent=11 // pred_region
          _
        $region56: #{tpu_custom_call.1} parent=11 // pred_fallthru
          _
      $region12: #{tpu_custom_call.1} parent=5 // pred_fallthru
        _
      %p376 = scmp.lt.s32.totalorder %s22, 6
      // Predicated region
      $region57: #{tpu_custom_call.1} parent=5 // pred_check
        %p377 = pneg %p376
      $region58: #{tpu_custom_call.1} parent=5 // pred_check_branch
        %379 = sbr.rel (%p377) target = $region60
      $region59: #{tpu_custom_call.1} parent=5 // pred_region
        // Predicated region
        $region61: #{tpu_custom_call.1} parent=59 // pred_check
          %p380 = pneg %p56
        $region62: #{tpu_custom_call.1} parent=59 // pred_check_branch
          %382 = sbr.rel (%p380) target = $region64
        $region63: #{tpu_custom_call.1} parent=59 // pred_region
          %p383 = scmp.lt.s32.totalorder %s29, 1
          %s384 = scalar_select %p383, %s29, 1
          %p385 = scmp.lt.s32.totalorder %s30, 2
          %s386 = scalar_select %p385, %s30, 2
          %s387 = smul.addr %s386, 3
          %s388 = smul.addr %s384, 9
          %s389 = sadd.s32 %s387, %s388
          %s390 = smul.addr %s389, 8
          %s391 = scalar_lea.vmem %s0, %s390
        $region64: #{tpu_custom_call.1} parent=59 // pred_fallthru
          _
      $region60: #{tpu_custom_call.1} parent=5 // pred_fallthru
        _
      %p392 = scmp.le.s32.totalorder 1, %s22
      %p393 = scmp.lt.s32.totalorder %s22, 7
      %p394 = pnand %p392, %p393
      %p395 = pneg %p394
      // Predicated region
      $region65: #{tpu_custom_call.1} parent=5 // pred_check
        _
      $region66: #{tpu_custom_call.1} parent=5 // pred_check_branch
        %397 = sbr.rel (%p394) target = $region68
      $region67: #{tpu_custom_call.1} parent=5 // pred_region
        %s398 = ssub.s32 %s22, 1
        // Predicated region
        $region69: #{tpu_custom_call.1} parent=67 // pred_check
          %p399 = pneg %p83
        $region70: #{tpu_custom_call.1} parent=67 // pred_check_branch
          %401 = sbr.rel (%p399) target = $region72
        $region71: #{tpu_custom_call.1} parent=67 // pred_region
          %403 = dma.done [#allocation4], 16
        $region72: #{tpu_custom_call.1} parent=67 // pred_fallthru
          _
        %404 = sfence
        %p405 = scmp.lt.s32.totalorder %s31, 1
        %s406 = scalar_select %p405, %s31, 1
        %p407 = scmp.lt.s32.totalorder %s32, 2
        %s408 = scalar_select %p407, %s32, 2
        %s409 = smul.addr %s408, 3
        %s410 = smul.addr %s406, 9
        %s411 = sadd.s32 %s409, %s410
        %s412 = smul.addr %s411, 8
        %s413 = scalar_lea.vmem %s0, %s412
        %p414 = pneg %p62
        %p415 = pneg %p59
        %p416 = pneg %p83
        %p417 = pneg %p80
        %p418 = pneg %p104
        %p419 = pneg %p101
        %p420 = pneg %p125
        %p421 = pneg %p122
        %p422 = pneg %p146
        %p423 = pneg %p143
        %p424 = pneg %p167
        %p425 = pneg %p164
        %p426 = pneg %p188
        %p427 = pneg %p185
        %p428 = pneg %p209
        %p429 = pneg %p206
        %p430 = pneg %p230
        %p431 = pneg %p227
        %p432 = pneg %p251
        %p433 = pneg %p248
        %p434 = pneg %p272
        %p435 = pneg %p269
        %p436 = pneg %p293
        %p437 = pneg %p290
        %p438 = pneg %p321
        %p439 = pneg %p318
        %s440 = sand.u32 %s308, 1
        %s441 = scalar_lea.sflag [#allocation3], %s440
        %s442 = sand.u32 %s308, 1
        %s443 = smul.addr %s442, 16
        %s444 = scalar_lea.vmem [#allocation5], %s443
        %p445 = scmp.lt.s32.totalorder %s31, 1
        %s446 = scalar_select %p445, %s31, 1
        %p447 = scmp.lt.s32.totalorder %s32, 2
        %s448 = scalar_select %p447, %s32, 2
        %s449 = smul.addr %s448, 3
        %s450 = smul.addr %s446, 9
        %s451 = sadd.s32 %s449, %s450
        %s452 = smul.addr %s451, 8
        %s453 = scalar_lea.vmem %s0, %s452
        %s454 = sld [smem:[#allocation2]]
        %s455 = sld [smem:[#allocation2 + $0x1]]
        %v456 = vld [vmem:[%s453] sm:$0xff]
        %v457 = vld [vmem:[%s453 + $0x8] sm:$0xff]
        %v458 = vld [vmem:[%s453 + $0x10] sm:$0xf]
        %v459 = vpack.c.bf16 %v457, %v456
        %v460 = vpack.c.bf16 %v458, %v458
        %v461 = vld [vmem:[%s2] sm:$0xf]
        %v462 = vld [vmem:[%s2 + $0x4] sm:$0xf]
        %v463 = vld [vmem:[%s2 + $0x8] sm:$0xf]
        %v464 = vld [vmem:[%s2 + $0xc] sm:$0xf]
        %v465 = vld [vmem:[%s2 + $0x10] sm:$0xf]
        %v466 = vld [vmem:[%s2 + $0x14] sm:$0xf]
        %v467 = vld [vmem:[%s2 + $0x18] sm:$0xf]
        %v468 = vld [vmem:[%s2 + $0x1c] sm:$0xf]
        %v469 = vld [vmem:[%s2 + $0x20] sm:$0xf]
        %v470 = vld [vmem:[%s2 + $0x24] sm:$0xf]
        %v471 = vld [vmem:[%s2 + $0x28] sm:$0xf]
        %v472 = vld [vmem:[%s2 + $0x2c] sm:$0xf]
        %v473 = vld [vmem:[%s2 + $0x30] sm:$0xf]
        %v474 = vld [vmem:[%s2 + $0x34] sm:$0xf]
        %v475 = vld [vmem:[%s2 + $0x38] sm:$0xf]
        %v476 = vld [vmem:[%s2 + $0x3c] sm:$0xf]
        %v477 = vld [vmem:[%s3] sm:$0x1]
        %v479 = vperm.slane %v477, 0
        %v497 = vunpack.c.l.b16 %v461
        %v498 = vunpack.c.l.b16 %v462
        %v499 = vunpack.c.l.b16 %v463
        %v500 = vunpack.c.l.b16 %v464
        %v501 = vunpack.c.l.b16 %v465
        %v502 = vunpack.c.l.b16 %v466
        %v503 = vunpack.c.l.b16 %v467
        %v504 = vunpack.c.l.b16 %v468
        %v505 = vunpack.c.l.b16 %v469
        %v506 = vunpack.c.l.b16 %v470
        %v507 = vunpack.c.l.b16 %v471
        %v508 = vunpack.c.l.b16 %v472
        %v509 = vunpack.c.l.b16 %v473
        %v510 = vunpack.c.l.b16 %v474
        %v511 = vunpack.c.l.b16 %v475
        %v512 = vunpack.c.l.b16 %v476
        %v513 = vpack.c.b16 %v498, %v497
        %v514 = vpack.c.b16 %v500, %v499
        %v515 = vpack.c.b16 %v502, %v501
        %v516 = vpack.c.b16 %v504, %v503
        %v517 = vpack.c.b16 %v506, %v505
        %v518 = vpack.c.b16 %v508, %v507
        %v519 = vpack.c.b16 %v510, %v509
        %v520 = vpack.c.b16 %v512, %v511
        %529 = vmatpush.bf16.msra.mxu0 %v520
        %530 = vmatpush.bf16.msra.mxu0 %v519
        %531 = vmatpush.bf16.msra.mxu0 %v518
        %532 = vmatpush.bf16.msra.mxu0 %v517
        %533 = vmatpush.bf16.msra.mxu0 %v516
        %534 = vmatpush.bf16.msra.mxu0 %v515
        %535 = vmatpush.bf16.msra.mxu0 %v514
        %536 = vmatpush.bf16.msra.mxu0 %v513
        %537 = vmatmul.bf16.gmra.mxu0 %v459
        %v538 = vpop.f32.mrf.mxu0
        %v539 = vadd.f32 %v479, %v538
        %v540 = vpop.f32.mrf.mxu0
        %v541 = vadd.f32 %v479, %v540
        %542 = vmatmul.bf16.gmra.mxu0 %v460
        %v543 = vpop.f32.mrf.mxu0
        %v544 = vadd.f32 %v479, %v543
        %v545 = vpop.f32.mrf.mxu0
        %546 = vdwg.mxu0
        %vm547 = vcmp.ge.f32.partialorder %v539, 0.0
        %vm548 = vcmp.ge.f32.partialorder %v541, 0.0
        %vm549 = vcmp.ge.f32.partialorder %v544, 0.0
        %v550 = vstv %s454
        %v551 = vmul.f32 %v539, %v550
        %v552 = vmul.f32 %v541, %v550
        %v553 = vmul.f32 %v544, %v550
        %v554 = vsel %vm547, %v539, %v551
        %v555 = vsel %vm548, %v541, %v552
        %v556 = vsel %vm549, %v544, %v553
        %557 = vadd.xlane.f32.xlu0 %v554
        %v558 = vpop.xlane.xlu0 %557
        %559 = vadd.xlane.f32.xlu0 %v555
        %v560 = vpop.xlane.xlu0 %559
        %vm561 = vcmask 1043456
        %v562 = vsel %vm561, %v556, 0.0
        %563 = vadd.xlane.f32.xlu0 %v562
        %v564 = vpop.xlane.xlu0 %563
        %v565 = vmul.f32 %v554, %v554
        %v566 = vmul.f32 %v555, %v555
        %v567 = vmul.f32 %v556, %v556
        %568 = vadd.xlane.f32.xlu0 %v565
        %v569 = vpop.xlane.xlu0 %568
        %570 = vadd.xlane.f32.xlu0 %v566
        %v571 = vpop.xlane.xlu0 %570
        %v572 = vsel %vm561, %v567, 0.0
        %573 = vadd.xlane.f32.xlu0 %v572
        %v574 = vpop.xlane.xlu0 %573
        %v575 = vmul.f32 %v558, 0.0078125
        %v576 = vmul.f32 %v560, 0.0078125
        %v577 = vmul.f32 %v564, 0.0078125
        %v578 = vmul.f32 %v569, 0.0078125
        %v579 = vmul.f32 %v571, 0.0078125
        %v580 = vmul.f32 %v574, 0.0078125
        %v581 = vmul.f32 %v575, %v575
        %v582 = vmul.f32 %v576, %v576
        %v583 = vmul.f32 %v577, %v577
        %v584 = vsub.f32 %v578, %v581
        %v585 = vsub.f32 %v579, %v582
        %v586 = vsub.f32 %v580, %v583
        %v587 = vmax.f32 %v584, 0.0
        %v588 = vmax.f32 %v585, 0.0
        %v589 = vmax.f32 %v586, 0.0
        %v590 = vsub.f32 %v554, %v575
        %v591 = vsub.f32 %v555, %v576
        %v592 = vsub.f32 %v556, %v577
        %v593 = vadd.f32 %v587, 1e-05
        %v594 = vadd.f32 %v588, 1e-05
        %v595 = vadd.f32 %v589, 1e-05
        %v596 = vrsqrt.pop %v593
        %v597 = vmul.f32 %v596, %v593
        %v598 = vmul.f32 %v597, %v596
        %v599 = vmul.f32 0.5, %v598
        %v600 = vsub.f32 1.5, %v599
        %v601 = vmul.f32 %v596, %v600
        %vm602 = vweird.f32 %v593
        %vm603 = vweird.f32 %v596
        %vm604 = vmor %vm602, %vm603
        %v605 = vsel %vm604, %v596, %v601
        %v606 = vrsqrt.pop %v594
        %v607 = vmul.f32 %v606, %v594
        %v608 = vmul.f32 %v607, %v606
        %v609 = vmul.f32 0.5, %v608
        %v610 = vsub.f32 1.5, %v609
        %v611 = vmul.f32 %v606, %v610
        %vm612 = vweird.f32 %v594
        %vm613 = vweird.f32 %v606
        %vm614 = vmor %vm612, %vm613
        %v615 = vsel %vm614, %v606, %v611
        %v616 = vrsqrt.pop %v595
        %v617 = vmul.f32 %v616, %v595
        %v618 = vmul.f32 %v617, %v616
        %v619 = vmul.f32 0.5, %v618
        %v620 = vsub.f32 1.5, %v619
        %v621 = vmul.f32 %v616, %v620
        %vm622 = vweird.f32 %v595
        %vm623 = vweird.f32 %v616
        %vm624 = vmor %vm622, %vm623
        %v625 = vsel %vm624, %v616, %v621
        %v626 = vmul.f32 %v590, %v605
        %v627 = vmul.f32 %v591, %v615
        %v628 = vmul.f32 %v592, %v625
        %v629 = vld [vmem:[%s4] sm:$0x1]
        %v631 = vperm.slane %v629, 0
        %v633 = vmul.f32 %v626, %v631
        %v634 = vmul.f32 %v627, %v631
        %v635 = vmul.f32 %v628, %v631
        %v636 = vld [vmem:[%s5] sm:$0x1]
        %v638 = vperm.slane %v636, 0
        %v640 = vadd.f32 %v633, %v638
        %v641 = vadd.f32 %v634, %v638
        %v642 = vadd.f32 %v635, %v638
        %v643 = vlaneseq
        %v644 = vshrl.u32 %v643, 7
        %v645 = vadd.s32 %v644, 8
        %v646 = vadd.s32 %v644, 16
        %s647 = smul.u32 %s32, 16
        %v648 = vstv %s647
        %v649 = vadd.s32 %v644, %v648
        %v650 = vadd.s32 %v645, %v648
        %v651 = vadd.s32 %v646, %v648
        %vm652 = vcmp.ge.s32.totalorder %v649, 2
        %vm653 = vcmp.ge.s32.totalorder %v650, 2
        %vm654 = vcmp.ge.s32.totalorder %v651, 2
        %vm655 = vcmp.lt.s32.totalorder %v649, 42
        %vm656 = vcmp.lt.s32.totalorder %v650, 42
        %vm657 = vcmp.lt.s32.totalorder %v651, 42
        %vm658 = vmand %vm652, %vm655
        %vm659 = vmand %vm653, %vm656
        %vm660 = vmand %vm654, %vm657
        %v661 = vsel %vm658, 1, 0
        %v662 = vsel %vm659, 1, 0
        %v663 = vsel %vm660, 1, 0
        %vm664 = vcmp.eq.s32.totalorder %v661, 1
        %vm665 = vcmp.eq.s32.totalorder %v662, 1
        %vm666 = vcmp.eq.s32.totalorder %v663, 1
        %v667 = vsel %vm664, %v640, 0.0
        %v668 = vsel %vm665, %v641, 0.0
        %v669 = vsel %vm666, %v642, 0.0
        %v670 = vld [vmem:[%s7] sm:$0x1]
        %v671 = vld [vmem:[%s6] sm:$0x1]
        %v672 = vperm.slane %v671, 0
        %v673 = vmul.f32 %v672, %v667
        %v674 = vmul.f32 %v672, %v668
        %v676 = vperm.slane %v670, 0
        %v678 = vadd.f32 %v676, %v673
        %v679 = vadd.f32 %v676, %v674
        %v680 = vld [vmem:[%s6 + $0x1] sm:$0x1]
        %v681 = vperm.slane %v680, 0
        %v682 = vmul.f32 %v681, %v667
        %v683 = vmul.f32 %v681, %v668
        %v684 = vmul.f32 %v681, %v669
        %vm688 = vcmask 1045504
        %v689 = vrot.slane %v682, 2
        %v690 = vrot.slane %v683, 2
        %v691 = vsel %vm688, %v689, %v690
        %v692 = vrot.slane %v684, 2
        %v693 = vsel %vm688, %v690, %v692
        %v696 = vadd.f32 %v678, %v691
        %v697 = vadd.f32 %v679, %v693
        %v698 = vld [vmem:[%s6 + $0x2] sm:$0x1]
        %v699 = vperm.slane %v698, 0
        %v700 = vmul.f32 %v699, %v667
        %v701 = vmul.f32 %v699, %v668
        %v702 = vmul.f32 %v699, %v669
        %v706 = vrot.slane %v700, 4
        %v707 = vrot.slane %v701, 4
        %v708 = vsel %vm561, %v706, %v707
        %v709 = vrot.slane %v702, 4
        %v710 = vsel %vm561, %v707, %v709
        %v713 = vadd.f32 %v696, %v708
        %v714 = vadd.f32 %v697, %v710
        %vm715 = vcmp.ge.f32.partialorder %v713, 0.0
        %vm716 = vcmp.ge.f32.partialorder %v714, 0.0
        %v717 = vstv %s455
        %v718 = vmul.f32 %v713, %v717
        %v719 = vmul.f32 %v714, %v717
        %v720 = vsel %vm715, %v713, %v718
        %v721 = vsel %vm716, %v714, %v719
        %722 = vadd.xlane.f32.xlu0 %v720
        %v723 = vpop.xlane.xlu0 %722
        %724 = vadd.xlane.f32.xlu0 %v721
        %v725 = vpop.xlane.xlu0 %724
        %v726 = vmul.f32 %v720, %v720
        %v727 = vmul.f32 %v721, %v721
        %728 = vadd.xlane.f32.xlu0 %v726
        %v729 = vpop.xlane.xlu0 %728
        %730 = vadd.xlane.f32.xlu0 %v727
        %v731 = vpop.xlane.xlu0 %730
        %v732 = vmul.f32 %v723, 0.0078125
        %v733 = vmul.f32 %v725, 0.0078125
        %v734 = vmul.f32 %v729, 0.0078125
        %v735 = vmul.f32 %v731, 0.0078125
        %v736 = vmul.f32 %v732, %v732
        %v737 = vmul.f32 %v733, %v733
        %v738 = vsub.f32 %v734, %v736
        %v739 = vsub.f32 %v735, %v737
        %v740 = vmax.f32 %v738, 0.0
        %v741 = vmax.f32 %v739, 0.0
        %v742 = vsub.f32 %v720, %v732
        %v743 = vsub.f32 %v721, %v733
        %v744 = vadd.f32 %v740, 1e-05
        %v745 = vadd.f32 %v741, 1e-05
        %v746 = vrsqrt.pop %v744
        %v747 = vmul.f32 %v746, %v744
        %v748 = vmul.f32 %v747, %v746
        %v749 = vmul.f32 0.5, %v748
        %v750 = vsub.f32 1.5, %v749
        %v751 = vmul.f32 %v746, %v750
        %vm752 = vweird.f32 %v744
        %vm753 = vweird.f32 %v746
        %vm754 = vmor %vm752, %vm753
        %v755 = vsel %vm754, %v746, %v751
        %v756 = vrsqrt.pop %v745
        %v757 = vmul.f32 %v756, %v745
        %v758 = vmul.f32 %v757, %v756
        %v759 = vmul.f32 0.5, %v758
        %v760 = vsub.f32 1.5, %v759
        %v761 = vmul.f32 %v756, %v760
        %vm762 = vweird.f32 %v745
        %vm763 = vweird.f32 %v756
        %vm764 = vmor %vm762, %vm763
        %v765 = vsel %vm764, %v756, %v761
        %v766 = vmul.f32 %v742, %v755
        %v767 = vmul.f32 %v743, %v765
        %v768 = vld [vmem:[%s8] sm:$0x1]
        %v770 = vperm.slane %v768, 0
        %v772 = vmul.f32 %v766, %v770
        %v773 = vmul.f32 %v767, %v770
        %v774 = vld [vmem:[%s9] sm:$0x1]
        %v776 = vperm.slane %v774, 0
        %v778 = vadd.f32 %v772, %v776
        %v779 = vadd.f32 %v773, %v776
        %v780 = vpack.c.bf16 %v779, %v778
        %v781 = vld [vmem:[%s10] sm:$0xf]
        %v782 = vld [vmem:[%s10 + $0x4] sm:$0xf]
        %v783 = vld [vmem:[%s10 + $0x8] sm:$0xf]
        %v784 = vld [vmem:[%s10 + $0xc] sm:$0xf]
        %v785 = vld [vmem:[%s10 + $0x10] sm:$0xf]
        %v786 = vld [vmem:[%s10 + $0x14] sm:$0xf]
        %v787 = vld [vmem:[%s10 + $0x18] sm:$0xf]
        %v788 = vld [vmem:[%s10 + $0x1c] sm:$0xf]
        %v789 = vld [vmem:[%s10 + $0x20] sm:$0xf]
        %v790 = vld [vmem:[%s10 + $0x24] sm:$0xf]
        %v791 = vld [vmem:[%s10 + $0x28] sm:$0xf]
        %v792 = vld [vmem:[%s10 + $0x2c] sm:$0xf]
        %v793 = vld [vmem:[%s10 + $0x30] sm:$0xf]
        %v794 = vld [vmem:[%s10 + $0x34] sm:$0xf]
        %v795 = vld [vmem:[%s10 + $0x38] sm:$0xf]
        %v796 = vld [vmem:[%s10 + $0x3c] sm:$0xf]
        %v797 = vld [vmem:[%s11] sm:$0x1]
        %v799 = vperm.slane %v797, 0
        %v817 = vunpack.c.l.b16 %v781
        %v818 = vunpack.c.l.b16 %v782
        %v819 = vunpack.c.l.b16 %v783
        %v820 = vunpack.c.l.b16 %v784
        %v821 = vunpack.c.l.b16 %v785
        %v822 = vunpack.c.l.b16 %v786
        %v823 = vunpack.c.l.b16 %v787
        %v824 = vunpack.c.l.b16 %v788
        %v825 = vunpack.c.l.b16 %v789
        %v826 = vunpack.c.l.b16 %v790
        %v827 = vunpack.c.l.b16 %v791
        %v828 = vunpack.c.l.b16 %v792
        %v829 = vunpack.c.l.b16 %v793
        %v830 = vunpack.c.l.b16 %v794
        %v831 = vunpack.c.l.b16 %v795
        %v832 = vunpack.c.l.b16 %v796
        %v833 = vpack.c.b16 %v818, %v817
        %v834 = vpack.c.b16 %v820, %v819
        %v835 = vpack.c.b16 %v822, %v821
        %v836 = vpack.c.b16 %v824, %v823
        %v837 = vpack.c.b16 %v826, %v825
        %v838 = vpack.c.b16 %v828, %v827
        %v839 = vpack.c.b16 %v830, %v829
        %v840 = vpack.c.b16 %v832, %v831
        %849 = vmatpush.bf16.msra.mxu0 %v840
        %850 = vmatpush.bf16.msra.mxu0 %v839
        %851 = vmatpush.bf16.msra.mxu0 %v838
        %852 = vmatpush.bf16.msra.mxu0 %v837
        %853 = vmatpush.bf16.msra.mxu0 %v836
        %854 = vmatpush.bf16.msra.mxu0 %v835
        %855 = vmatpush.bf16.msra.mxu0 %v834
        %856 = vmatpush.bf16.msra.mxu0 %v833
        %857 = vmatmul.bf16.gmra.mxu0 %v780
        %v858 = vpop.f32.mrf.mxu0
        %v859 = vadd.f32 %v799, %v858
        %v860 = vpop.f32.mrf.mxu0
        %v861 = vadd.f32 %v799, %v860
        %862 = vdwg.mxu0
        %v863 = vld [vmem:[%s453 + $0x2] sm:$0xff]
        %v864 = vld [vmem:[%s453 + $0xa] sm:$0xff]
        %v865 = vadd.f32 %v863, %v859
        %v866 = vadd.f32 %v864, %v861
        %867 = vst [vmem:[%s444] sm:$0xff] %v865
        %868 = vst [vmem:[%s444 + $0x8] sm:$0xff] %v866
        %s869 = sand.u32 %s308, 1
        %s870 = scalar_lea.sflag [#allocation3], %s869
        %s871 = sand.u32 %s308, 1
        %s872 = smul.addr %s871, 16
        %s873 = scalar_lea.vmem [#allocation5], %s872
        // Predicated region
        $region73: #{tpu_custom_call.1} parent=67 // pred_check
          %p874 = pneg %p318
        $region74: #{tpu_custom_call.1} parent=67 // pred_check_branch
          %876 = sbr.rel (%p874) target = $region76
        $region75: #{tpu_custom_call.1} parent=67 // pred_region
          %878 = vsyncadd %s870, 0
          %s879 = smul.addr %s32, 2
          %s880 = smul.addr %s31, 6
          %s881 = sadd.s32 %s879, %s880
          %s882 = smul.addr %s881, 8
          %s883 = scalar_lea.hbm %s12, %s882
          %s884 = sshll.u32 %s873, 4
          %s885 = int_to_ptr.vmem [resolvable:$true] %s884
          %s886 = sshll.u32 %s883, 4
          %s887 = int_to_ptr.hbm [resolvable:$true] %s886
          %892 = dma.vmem_to_hbm [thread:$0]  %s885, 256, %s887, %s870, 128, 128, 8
        $region76: #{tpu_custom_call.1} parent=67 // pred_fallthru
          _
      $region68: #{tpu_custom_call.1} parent=5 // pred_fallthru
        _
      %p893 = scmp.le.s32.totalorder 2, %s22
      // Predicated region
      $region77: #{tpu_custom_call.1} parent=5 // pred_check
        %p894 = pneg %p893
      $region78: #{tpu_custom_call.1} parent=5 // pred_check_branch
        %896 = sbr.rel (%p894) target = $region80
      $region79: #{tpu_custom_call.1} parent=5 // pred_region
        %s897 = ssub.s32 %s22, 2
        // Predicated region
        $region81: #{tpu_custom_call.1} parent=79 // pred_check
          %p898 = pneg %p324
        $region82: #{tpu_custom_call.1} parent=79 // pred_check_branch
          %900 = sbr.rel (%p898) target = $region84
        $region83: #{tpu_custom_call.1} parent=79 // pred_region
          %s901 = sand.u32 %s309, 1
          %s902 = scalar_lea.sflag [#allocation3], %s901
          %s903 = sand.u32 %s309, 1
          %s904 = smul.addr %s903, 16
          %s905 = scalar_lea.vmem [#allocation5], %s904
          %907 = dma.done %s902, 256
        $region84: #{tpu_custom_call.1} parent=79 // pred_fallthru
          _
      $region80: #{tpu_custom_call.1} parent=5 // pred_fallthru
        _
    $region6: #{tpu_custom_call.1} parent=1 // loop_footer
      %s26 = sadd.s32 1, %s22
    $region7: #{tpu_custom_call.1} parent=1 // loop_footer_branch
      %21 = sbr.rel target = $region3
    $region8: #{tpu_custom_call.1} parent=1 // loop_exit
      _
    %908 = vsyncpa [#allocation3], 1
    %s909 = scalar_lea.sflag [#allocation3], 1
    %910 = vsyncpa %s909, 1
    %911 = vsyncpa [#allocation4], 1
    %s912 = scalar_lea.sflag [#allocation4], 1
    %913 = vsyncpa %s912, 1

</llo_original>
